<compile_context>
chip_gen: v7x
topology: tpu7x:2x2x1
jax: 0.10.0
libtpu: 0.0.40
codegen_flags: <defaults>
</compile_context>

<pallas_src>
import functools
import math

import numpy as np

import jax
import jax.numpy as jnp
from jax import lax
from jax.experimental import pallas as pl
from jax.experimental.pallas import tpu as pltpu

NUM_TIMESTEPS = 1000
BETA_START = 1e-4
BETA_END = 2e-2


def get_beta_schedule(beta_start=BETA_START, beta_end=BETA_END,
                      num_diffusion_timesteps=NUM_TIMESTEPS):
    betas = np.linspace(beta_start, beta_end, num_diffusion_timesteps,
                        dtype=np.float64)
    return jnp.asarray(betas, dtype=jnp.float32)


# --------------------------------------------------------------------------
# helpers
# --------------------------------------------------------------------------

def _round_up(x, m):
    return (x + m - 1) // m * m


def _feat_pad(d):
    """Pad features to a 256 granule so the 256x256 MXU (v6e/v7x) runs full."""
    return _round_up(d, 256)


def _choose_feat_tile(d_pad):
    """Largest feature tile in {1024, 512, 256} dividing d_pad."""
    for t in (1024, 512, 256):
        if d_pad % t == 0:
            return t
    return 256  # unreachable: d_pad is a multiple of 256


def _choose_row_tile(n, tf):
    """Largest power-of-two row tile; capped so worst-case VMEM stays <~20 MiB
    (double-buffered inputs + outputs + scratch), which is v7x-safe."""
    n8 = _round_up(n, 8)
    cap = 256 if tf >= 1024 else 512
    for tm in (512, 256, 128, 64, 32, 16, 8):
        if tm <= min(n8, cap):
            return tm, _round_up(n8, tm)
    return 8, n8


def _pad2d(x, n_pad, d_pad):
    n, d = x.shape
    if n == n_pad and d == d_pad:
        return x
    return jnp.pad(x, ((0, n_pad - n), (0, d_pad - d)))


# --------------------------------------------------------------------------
# fused Pallas kernel: noising + denoiser matmul + temb + per-sample SSE
# --------------------------------------------------------------------------

def _fused_kernel(skes_ref, sils_ref, e_ref, sqa_ref, sq1ma_ref, t_ref,
                  w1_ref, w2_ref,
                  preds_ref, sse_ref,
                  acc_ref, e_sc_ref,
                  *, tm, tn, d_actual, d_pad, n_actual, n_pad):
    i = pl.program_id(0)
    j = pl.program_id(1)
    k = pl.program_id(2)
    nk = pl.num_programs(2)

    @pl.when(k == 0)
    def _():
        acc_ref[...] = jnp.zeros_like(acc_ref)

    # Stash the f32 e K-tile that coincides with this output column tile
    # (tk == tn), so the SSE never re-reads e from HBM.
    @pl.when(k == j)
    def _():
        e_sc_ref[...] = e_ref[...]

    # Forward-diffusion noising in f32 (VPU work that overlaps the MXU dots;
    # per-row scalars broadcast across lanes).  sils arrives as bf16.
    sil_t = (sils_ref[...].astype(jnp.float32) * sqa_ref[...]
             + e_ref[...] * sq1ma_ref[...])

    # Single accumulator update, two MXU dots == concat([skes, sil_t], -1) @
    # [[W1],[W2]] (no (N, 2D) concat ever materialized).  bf16 feeds the MXU,
    # accumulation stays f32; one read-modify-write pass over acc per k step.
    acc_ref[...] += (
        jnp.dot(skes_ref[...], w1_ref[...], preferred_element_type=jnp.float32)
        + jnp.dot(sil_t.astype(jnp.bfloat16), w2_ref[...],
                  preferred_element_type=jnp.float32))

    @pl.when(k == nk - 1)
    def _():
        # In-kernel sinusoidal timestep embedding for columns [j*tn, (j+1)*tn):
        #   emb[:, c]      = sin(t * exp(-log(1e4) * c / half))        c <  half
        #   emb[:, half+c] = cos(t * exp(-log(1e4) * c / half))        c >= half
        half = d_pad // 2
        col = j * tn + lax.broadcasted_iota(jnp.int32, (tm, tn), 1)
        idx = jnp.where(col < half, col, col - half).astype(jnp.float32)
        arg = t_ref[...] * jnp.exp(idx * (-math.log(10000.0) / half))
        temb = jnp.where(col < half, jnp.sin(arg), jnp.cos(arg))

        preds = jnp.tanh(acc_ref[...] + temb)

        # Zero padded output columns / rows so they never pollute the SSE.
        if d_pad != d_actual:
            preds = jnp.where(col < d_actual, preds, 0.0)
        if n_pad != n_actual:
            row = i * tm + lax.broadcasted_iota(jnp.int32, (tm, tn), 0)
            preds = jnp.where(row < n_actual, preds, 0.0)

        preds_ref[...] = preds.astype(preds_ref.dtype)

        # Lane-dense per-sample SSE partials: fold lane groups with plain VPU
        # adds (no cross-lane XLU reduce, no lane-sparse store).
        d = e_sc_ref[...] - preds
        dsq = d * d
        parts = dsq[:, 0:128]
        for g in range(1, tn // 128):
            parts = parts + dsq[:, g * 128:(g + 1) * 128]
        sse_ref[...] = parts


def fused_diffusion_step(skes, sils, e, sqrt_a, sqrt_1ma, w1, w2, t_float,
                         *, d_actual, d_pad):
    """Returns (preds_padded (n_pad, d_pad) f32,
                sse_partials (n_pad, nj*128) f32)  with nj = d_pad // tile."""
    N, D = sils.shape
    assert D == d_actual
    assert _feat_pad(D) == d_pad

    tf = _choose_feat_tile(d_pad)
    tm, n_pad = _choose_row_tile(N, tf)
    tk = tn = tf
    nj = d_pad // tn

    # bf16 activation streaming for the matmul path; e stays f32 for the SSE.
    skes_p = _pad2d(skes.astype(jnp.bfloat16), n_pad, d_pad)
    sils_p = _pad2d(sils.astype(jnp.bfloat16), n_pad, d_pad)
    e_p = _pad2d(e, n_pad, d_pad)
    sqa_p = _pad2d(sqrt_a, n_pad, 1)
    sq1ma_p = _pad2d(sqrt_1ma, n_pad, 1)
    t_p = jnp.pad(t_float, (0, n_pad - N)).reshape(n_pad, 1)

    grid = (n_pad // tm, nj, d_pad // tk)

    kernel = functools.partial(_fused_kernel, tm=tm, tn=tn,
                               d_actual=d_actual, d_pad=d_pad,
                               n_actual=N, n_pad=n_pad)

    # TODO(synk): for tiny-M weight-streaming-bound cases (v5e) consider
    # pl.Buffered(3) on the weight specs / stacking W1,W2 into one DMA stream.
    preds_pad, sse_part = pl.pallas_call(
        kernel,
        out_shape=(
            jax.ShapeDtypeStruct((n_pad, d_pad), jnp.float32),      # preds
            jax.ShapeDtypeStruct((n_pad, nj * 128), jnp.float32),   # SSE partials
        ),
        grid_spec=pltpu.PrefetchScalarGridSpec(
            num_scalar_prefetch=0,
            grid=grid,
            in_specs=[
                pl.BlockSpec((tm, tk), lambda i, j, k: (i, k)),   # skes (bf16 K tile)
                pl.BlockSpec((tm, tk), lambda i, j, k: (i, k)),   # sils (bf16 K tile)
                pl.BlockSpec((tm, tk), lambda i, j, k: (i, k)),   # e    (f32  K tile)
                pl.BlockSpec((tm, 1), lambda i, j, k: (i, 0)),    # sqrt(a)
                pl.BlockSpec((tm, 1), lambda i, j, k: (i, 0)),    # sqrt(1-a)
                pl.BlockSpec((tm, 1), lambda i, j, k: (i, 0)),    # t (float)
                pl.BlockSpec((tk, tn), lambda i, j, k: (k, j)),   # W1 (bf16)
                pl.BlockSpec((tk, tn), lambda i, j, k: (k, j)),   # W2 (bf16)
            ],
            out_specs=[
                pl.BlockSpec((tm, tn), lambda i, j, k: (i, j)),   # preds
                pl.BlockSpec((tm, 128), lambda i, j, k: (i, j)),  # SSE lane partials
            ],
            scratch_shapes=[
                pltpu.VMEM((tm, tn), jnp.float32),                # matmul acc
                pltpu.VMEM((tm, tn), jnp.float32),                # stashed e tile
            ],
        ),
        compiler_params=pltpu.CompilerParams(
            dimension_semantics=("parallel", "parallel", "arbitrary"),
            vmem_limit_bytes=48 * 1024 * 1024,
        ),
    )(skes_p, sils_p, e_p, sqa_p, sq1ma_p, t_p, w1, w2)

    return preds_pad, sse_part


# --------------------------------------------------------------------------
# synthetic denoiser (stand-in for the external `model` argument)
# --------------------------------------------------------------------------

class SyntheticDenoiser:
    """preds = tanh(skes @ W1 + sil_t @ W2 + timestep_embedding(t)).

    Mathematically identical to concat([skes, sil_t], -1) @ W with W split into
    two (D, D) halves, so no concat tensor is ever built.  The forward-diffusion
    noising, the timestep embedding and the per-sample SSE of the loss are all
    fused into the same kernel.
    """
    # TODO(synk): the real denoising network is an external nn.Module argument
    # in the PyTorch module; this deterministic linear+tanh denoiser stands in.

    def __init__(self, d, key=None):
        self.d = d
        self.d_pad = _feat_pad(d)
        key = jax.random.PRNGKey(42) if key is None else key
        k1, k2 = jax.random.split(key)
        scale = 0.02
        self.w1 = (jax.random.normal(k1, (self.d_pad, self.d_pad), jnp.float32)
                   * scale).astype(jnp.bfloat16)
        self.w2 = (jax.random.normal(k2, (self.d_pad, self.d_pad), jnp.float32)
                   * scale).astype(jnp.bfloat16)

    def fused_apply(self, skes_flat, sils_flat, e_flat, sqrt_a, sqrt_1ma,
                    t_float):
        N, D = sils_flat.shape
        preds_pad, sse_part = fused_diffusion_step(
            skes_flat, sils_flat, e_flat, sqrt_a, sqrt_1ma,
            self.w1, self.w2, t_float, d_actual=D, d_pad=self.d_pad)
        preds = preds_pad[:N, :D]
        sse_rows = jnp.sum(sse_part[:N], axis=-1)      # (N,) per-sample SSE
        return preds, sse_rows


# --------------------------------------------------------------------------
# generalized_diffusion_branch equivalent
# --------------------------------------------------------------------------

class GeneralizedDiffusionBranch:
    def __init__(self, num_timesteps=NUM_TIMESTEPS):
        self.betas = get_beta_schedule(num_diffusion_timesteps=num_timesteps)
        self.num_timesteps = num_timesteps
        self.alphas_cumprod = jnp.cumprod(1.0 - self.betas)        # (T,)

    def forward(self, model, skes, sils, key):
        # rearrange 'n c s h w -> (n s) c h w', then flatten features.
        # TODO(synk): the rearrange stays as a one-time XLA transpose in the
        # wrapper; folding it into the BlockSpec index_map would require
        # non-rectangular row tiles.  For best MXU utilization callers should
        # batch as many rows (n*s) per invocation as possible.
        n0, c, s, h, w = sils.shape
        N = n0 * s
        D = c * h * w
        sils_flat = jnp.transpose(sils, (0, 2, 1, 3, 4)).reshape(N, D)
        skes_flat = jnp.transpose(skes, (0, 2, 1, 3, 4)).reshape(N, D)
        sils_flat = sils_flat.astype(jnp.float32)
        skes_flat = skes_flat.astype(jnp.float32)

        k_e, k_t = jax.random.split(key)
        e_flat = jax.random.normal(k_e, (N, D), dtype=jnp.float32)
        t_half = jax.random.randint(k_t, (N // 2 + 1,), 0, self.num_timesteps)
        t = jnp.concatenate([t_half, self.num_timesteps - t_half - 1],
                            axis=0)[:N]

        a = jnp.take(self.alphas_cumprod, t)                       # (N,)
        sqrt_a = jnp.sqrt(a).reshape(N, 1).astype(jnp.float32)
        sqrt_1ma = jnp.sqrt(1.0 - a).reshape(N, 1).astype(jnp.float32)

        # single fused kernel: noising + denoiser matmul + temb + per-sample SSE
        preds_flat, sse = model.fused_apply(
            skes_flat, sils_flat, e_flat, sqrt_a, sqrt_1ma,
            t.astype(jnp.float32))

        loss = jnp.mean(sse)                                       # scalar
        preds = preds_flat.reshape(N, c, h, w)
        return loss, preds


if __name__ == "__main__":
    key = jax.random.PRNGKey(0)
    k_sils, k_skes, k_fwd = jax.random.split(key, 3)

    # small shapes consistent with the module: n=2, c=1, s=4, h=w=16
    n0, c, s, h, w = 2, 1, 4, 16, 16
    sils = jax.random.normal(k_sils, (n0, c, s, h, w), dtype=jnp.float32)
    skes = jax.random.normal(k_skes, (n0, c, s, h, w), dtype=jnp.float32)

    branch = GeneralizedDiffusionBranch(num_timesteps=NUM_TIMESTEPS)
    model = SyntheticDenoiser(d=c * h * w)

    loss, preds = branch.forward(model, skes, sils, k_fwd)
    jax.block_until_ready((loss, preds))

    assert preds.shape == (n0 * s, c, h, w)
    assert loss.shape == ()
    assert bool(jnp.isfinite(loss))
    print("KERNEL_OK")
</pallas_src>

<mosaic_0001>
module attributes {stable_mosaic.version = 11 : i64} {
  func.func @_fused_kernel(%arg0: i32, %arg1: i32, %arg2: i32, %arg3: memref<8x256xbf16, #tpu.memory_space<vmem>>, %arg4: memref<8x256xbf16, #tpu.memory_space<vmem>>, %arg5: memref<8x256xf32, #tpu.memory_space<vmem>>, %arg6: memref<8x1xf32, #tpu.memory_space<vmem>>, %arg7: memref<8x1xf32, #tpu.memory_space<vmem>>, %arg8: memref<8x1xf32, #tpu.memory_space<vmem>>, %arg9: memref<256x256xbf16, #tpu.memory_space<vmem>>, %arg10: memref<256x256xbf16, #tpu.memory_space<vmem>>, %arg11: memref<8x256xf32, #tpu.memory_space<vmem>>, %arg12: memref<8x128xf32, #tpu.memory_space<vmem>>, %arg13: memref<8x256xf32, #tpu.memory_space<vmem>>, %arg14: memref<8x256xf32, #tpu.memory_space<vmem>>) attributes {dimension_semantics = [#tpu.dimension_semantics<parallel>, #tpu.dimension_semantics<parallel>, #tpu.dimension_semantics<arbitrary>], iteration_bounds = array<i64: 1, 1, 1>, scalar_prefetch = 0 : i64, scratch_operands = 2 : i64, tpu.core_type = #tpu.core_type<tc>, window_params = [{transform_indices = @transform_0, window_bounds = array<i64: 8, 256>}, {transform_indices = @transform_1, window_bounds = array<i64: 8, 256>}, {transform_indices = @transform_2, window_bounds = array<i64: 8, 256>}, {transform_indices = @transform_3, window_bounds = array<i64: 8, 1>}, {transform_indices = @transform_4, window_bounds = array<i64: 8, 1>}, {transform_indices = @transform_5, window_bounds = array<i64: 8, 1>}, {transform_indices = @transform_6, window_bounds = array<i64: 256, 256>}, {transform_indices = @transform_7, window_bounds = array<i64: 256, 256>}, {transform_indices = @transform_8, window_bounds = array<i64: 8, 256>}, {transform_indices = @transform_9, window_bounds = array<i64: 8, 128>}]} {
    %c0_i32 = arith.constant 0 : i32
    %0 = arith.cmpi eq, %arg2, %c0_i32 : i32
    %1 = arith.extui %0 : i1 to i32
    %c0_i32_0 = arith.constant 0 : i32
    %2 = arith.cmpi ne, %1, %c0_i32_0 : i32
    scf.if %2 {
      %cst_22 = arith.constant 0.000000e+00 : f32
      %29 = vector.broadcast %cst_22 : f32 to vector<8x256xf32>
      %c0_23 = arith.constant 0 : index
      %c0_24 = arith.constant 0 : index
      %30 = vector.load %arg13[%c0_23, %c0_24] : memref<8x256xf32, #tpu.memory_space<vmem>>, vector<8x256xf32>
      tpu.vector_store %arg13[%c0_23, %c0_24], %29 {strides = array<i32>} : memref<8x256xf32, #tpu.memory_space<vmem>>, vector<8x256xf32>,
    } else {
    }
    %3 = arith.cmpi eq, %arg2, %arg1 : i32
    %4 = arith.extui %3 : i1 to i32
    %c0_i32_1 = arith.constant 0 : i32
    %5 = arith.cmpi ne, %4, %c0_i32_1 : i32
    scf.if %5 {
      %c0_22 = arith.constant 0 : index
      %c0_23 = arith.constant 0 : index
      %29 = vector.load %arg5[%c0_22, %c0_23] : memref<8x256xf32, #tpu.memory_space<vmem>>, vector<8x256xf32>
      %c0_24 = arith.constant 0 : index
      %c0_25 = arith.constant 0 : index
      %30 = vector.load %arg14[%c0_24, %c0_25] : memref<8x256xf32, #tpu.memory_space<vmem>>, vector<8x256xf32>
      tpu.vector_store %arg14[%c0_24, %c0_25], %29 {strides = array<i32>} : memref<8x256xf32, #tpu.memory_space<vmem>>, vector<8x256xf32>,
    } else {
    }
    %c0 = arith.constant 0 : index
    %c0_2 = arith.constant 0 : index
    %6 = vector.load %arg4[%c0, %c0_2] : memref<8x256xbf16, #tpu.memory_space<vmem>>, vector<8x256xbf16>
    %7 = arith.extf %6 : vector<8x256xbf16> to vector<8x256xf32>
    %c0_3 = arith.constant 0 : index
    %c0_4 = arith.constant 0 : index
    %8 = vector.load %arg6[%c0_3, %c0_4] : memref<8x1xf32, #tpu.memory_space<vmem>>, vector<8x1xf32>
    %9 = vector.broadcast %8 : vector<8x1xf32> to vector<8x256xf32>
    %10 = arith.mulf %7, %9 : vector<8x256xf32>
    %c0_5 = arith.constant 0 : index
    %c0_6 = arith.constant 0 : index
    %11 = vector.load %arg5[%c0_5, %c0_6] : memref<8x256xf32, #tpu.memory_space<vmem>>, vector<8x256xf32>
    %c0_7 = arith.constant 0 : index
    %c0_8 = arith.constant 0 : index
    %12 = vector.load %arg7[%c0_7, %c0_8] : memref<8x1xf32, #tpu.memory_space<vmem>>, vector<8x1xf32>
    %13 = vector.broadcast %12 : vector<8x1xf32> to vector<8x256xf32>
    %14 = arith.mulf %11, %13 : vector<8x256xf32>
    %15 = arith.addf %10, %14 : vector<8x256xf32>
    %c0_9 = arith.constant 0 : index
    %c0_10 = arith.constant 0 : index
    %16 = vector.load %arg13[%c0_9, %c0_10] : memref<8x256xf32, #tpu.memory_space<vmem>>, vector<8x256xf32>
    %c0_11 = arith.constant 0 : index
    %c0_12 = arith.constant 0 : index
    %17 = vector.load %arg3[%c0_11, %c0_12] : memref<8x256xbf16, #tpu.memory_space<vmem>>, vector<8x256xbf16>
    %c0_13 = arith.constant 0 : index
    %c0_14 = arith.constant 0 : index
    %18 = vector.load %arg9[%c0_13, %c0_14] : memref<256x256xbf16, #tpu.memory_space<vmem>>, vector<256x256xbf16>
    %cst = arith.constant dense<0.000000e+00> : vector<8x256xf32>
    %19 = tpu.matmul %17, %18, %cst {dimension_numbers = #tpu.dot_dimension_numbers<[1], [0], [0], [1], [0, 0, 1, 1], [], []>} : vector<8x256xbf16>, vector<256x256xbf16>, vector<8x256xf32> -> vector<8x256xf32>
    %20 = arith.truncf %15 : vector<8x256xf32> to vector<8x256xbf16>
    %c0_15 = arith.constant 0 : index
    %c0_16 = arith.constant 0 : index
    %21 = vector.load %arg10[%c0_15, %c0_16] : memref<256x256xbf16, #tpu.memory_space<vmem>>, vector<256x256xbf16>
    %cst_17 = arith.constant dense<0.000000e+00> : vector<8x256xf32>
    %22 = tpu.matmul %20, %21, %cst_17 {dimension_numbers = #tpu.dot_dimension_numbers<[1], [0], [0], [1], [0, 0, 1, 1], [], []>} : vector<8x256xbf16>, vector<256x256xbf16>, vector<8x256xf32> -> vector<8x256xf32>
    %23 = arith.addf %19, %22 : vector<8x256xf32>
    %24 = arith.addf %16, %23 : vector<8x256xf32>
    %c0_18 = arith.constant 0 : index
    %c0_19 = arith.constant 0 : index
    %25 = vector.load %arg13[%c0_18, %c0_19] : memref<8x256xf32, #tpu.memory_space<vmem>>, vector<8x256xf32>
    tpu.vector_store %arg13[%c0_18, %c0_19], %24 {strides = array<i32>} : memref<8x256xf32, #tpu.memory_space<vmem>>, vector<8x256xf32>,
    %c0_i32_20 = arith.constant 0 : i32
    %26 = arith.cmpi eq, %arg2, %c0_i32_20 : i32
    %27 = arith.extui %26 : i1 to i32
    %c0_i32_21 = arith.constant 0 : i32
    %28 = arith.cmpi ne, %27, %c0_i32_21 : i32
    scf.if %28 {
      %c256_i32 = arith.constant 256 : i32
      %29 = arith.muli %arg1, %c256_i32 : i32
      %30 = tpu.iota {dimensions = array<i32: 1>} : vector<8x256xi32>
      %31 = vector.broadcast %29 : i32 to vector<8x256xi32>
      %32 = arith.addi %31, %30 : vector<8x256xi32>
      %c128_i32 = arith.constant 128 : i32
      %33 = vector.broadcast %c128_i32 : i32 to vector<8x256xi32>
      %34 = arith.cmpi slt, %32, %33 : vector<8x256xi32>
      %c128_i32_22 = arith.constant 128 : i32
      %35 = vector.broadcast %c128_i32_22 : i32 to vector<8x256xi32>
      %36 = arith.subi %32, %35 : vector<8x256xi32>
      %37 = arith.select %34, %32, %36 : vector<8x256xi1>, vector<8x256xi32>
      %38 = arith.sitofp %37 : vector<8x256xi32> to vector<8x256xf32>
      %c0_23 = arith.constant 0 : index
      %c0_24 = arith.constant 0 : index
      %39 = vector.load %arg8[%c0_23, %c0_24] : memref<8x1xf32, #tpu.memory_space<vmem>>, vector<8x1xf32>
      %cst_25 = arith.constant -0.0719557852 : f32
      %40 = vector.broadcast %cst_25 : f32 to vector<8x256xf32>
      %41 = arith.mulf %38, %40 : vector<8x256xf32>
      %42 = math.exp %41 : vector<8x256xf32>
      %43 = vector.broadcast %39 : vector<8x1xf32> to vector<8x256xf32>
      %44 = arith.mulf %43, %42 : vector<8x256xf32>
      %c128_i32_26 = arith.constant 128 : i32
      %45 = vector.broadcast %c128_i32_26 : i32 to vector<8x256xi32>
      %46 = arith.cmpi slt, %32, %45 : vector<8x256xi32>
      %47 = math.sin %44 : vector<8x256xf32>
      %48 = math.cos %44 : vector<8x256xf32>
      %49 = arith.select %46, %47, %48 : vector<8x256xi1>, vector<8x256xf32>
      %c0_27 = arith.constant 0 : index
      %c0_28 = arith.constant 0 : index
      %50 = vector.load %arg13[%c0_27, %c0_28] : memref<8x256xf32, #tpu.memory_space<vmem>>, vector<8x256xf32>
      %51 = arith.addf %50, %49 : vector<8x256xf32>
      %52 = math.tanh %51 : vector<8x256xf32>
      %c0_29 = arith.constant 0 : index
      %c0_30 = arith.constant 0 : index
      %53 = vector.load %arg11[%c0_29, %c0_30] : memref<8x256xf32, #tpu.memory_space<vmem>>, vector<8x256xf32>
      tpu.vector_store %arg11[%c0_29, %c0_30], %52 {strides = array<i32>} : memref<8x256xf32, #tpu.memory_space<vmem>>, vector<8x256xf32>,
      %c0_31 = arith.constant 0 : index
      %c0_32 = arith.constant 0 : index
      %54 = vector.load %arg14[%c0_31, %c0_32] : memref<8x256xf32, #tpu.memory_space<vmem>>, vector<8x256xf32>
      %55 = arith.subf %54, %52 : vector<8x256xf32>
      %56 = arith.mulf %55, %55 : vector<8x256xf32>
      %57 = vector.extract_strided_slice %56 {offsets = [0, 0], sizes = [8, 128], strides = [1, 1]} : vector<8x256xf32> to vector<8x128xf32>
      %58 = vector.extract_strided_slice %56 {offsets = [0, 128], sizes = [8, 128], strides = [1, 1]} : vector<8x256xf32> to vector<8x128xf32>
      %59 = arith.addf %57, %58 : vector<8x128xf32>
      %c0_33 = arith.constant 0 : index
      %c0_34 = arith.constant 0 : index
      %60 = vector.load %arg12[%c0_33, %c0_34] : memref<8x128xf32, #tpu.memory_space<vmem>>, vector<8x128xf32>
      tpu.vector_store %arg12[%c0_33, %c0_34], %59 {strides = array<i32>} : memref<8x128xf32, #tpu.memory_space<vmem>>, vector<8x128xf32>,
    } else {
    }
    return
  }
  func.func @transform_0(%arg0: i32, %arg1: i32, %arg2: i32) -> (i32, i32) {
    %c0_i32 = arith.constant 0 : i32
    return %arg0, %arg2 : i32, i32
  }
  func.func @transform_1(%arg0: i32, %arg1: i32, %arg2: i32) -> (i32, i32) {
    %c0_i32 = arith.constant 0 : i32
    return %arg0, %arg2 : i32, i32
  }
  func.func @transform_2(%arg0: i32, %arg1: i32, %arg2: i32) -> (i32, i32) {
    %c0_i32 = arith.constant 0 : i32
    return %arg0, %arg2 : i32, i32
  }
  func.func @transform_3(%arg0: i32, %arg1: i32, %arg2: i32) -> (i32, i32) {
    %c0_i32 = arith.constant 0 : i32
    %c0_i32_0 = arith.constant 0 : i32
    return %arg0, %c0_i32 : i32, i32
  }
  func.func @transform_4(%arg0: i32, %arg1: i32, %arg2: i32) -> (i32, i32) {
    %c0_i32 = arith.constant 0 : i32
    %c0_i32_0 = arith.constant 0 : i32
    return %arg0, %c0_i32 : i32, i32
  }
  func.func @transform_5(%arg0: i32, %arg1: i32, %arg2: i32) -> (i32, i32) {
    %c0_i32 = arith.constant 0 : i32
    %c0_i32_0 = arith.constant 0 : i32
    return %arg0, %c0_i32 : i32, i32
  }
  func.func @transform_6(%arg0: i32, %arg1: i32, %arg2: i32) -> (i32, i32) {
    %c0_i32 = arith.constant 0 : i32
    return %arg2, %arg1 : i32, i32
  }
  func.func @transform_7(%arg0: i32, %arg1: i32, %arg2: i32) -> (i32, i32) {
    %c0_i32 = arith.constant 0 : i32
    return %arg2, %arg1 : i32, i32
  }
  func.func @transform_8(%arg0: i32, %arg1: i32, %arg2: i32) -> (i32, i32) {
    %c0_i32 = arith.constant 0 : i32
    return %arg0, %arg1 : i32, i32
  }
  func.func @transform_9(%arg0: i32, %arg1: i32, %arg2: i32) -> (i32, i32) {
    %c0_i32 = arith.constant 0 : i32
    return %arg0, %arg1 : i32, i32
  }
}

</mosaic_0001>

<llo_original>
// kernel: tpu_custom_call.1
$region0: #{tpu_custom_call.1}
  #allocation0 [shape = 'u32[]', space=smem, size = 0x4, offset = 0x4, fixed_abs, tag = 'smem constant byte address 0x4 - core index']
  #allocation1 [shape = 'u32[144,128]{1,0:T(1,128)}', space=vmem, size = 0x12000, scoped, tag = 'internal scratch']
  #allocation2 [shape = 'f32[8,256]{1,0:T(8,128)}', space=vmem, size = 0x2000, scoped, tag = 'scratch operand']
  #allocation3 [shape = 'f32[8,256]{1,0:T(8,128)}', space=vmem, size = 0x2000, scoped, tag = 'scratch operand']
  %s0 = inlined_call_operand.vmem [shape: bf16[8,256], index: 0, kind: input, shape index: {}]
  %s1 = inlined_call_operand.hbm [shape: bf16[8,256], index: 1, kind: input, shape index: {}]
  %s2 = inlined_call_operand.vmem [shape: f32[8,256], index: 2, kind: input, shape index: {}]
  %s3 = inlined_call_operand.vmem [shape: f32[8,1], index: 3, kind: input, shape index: {}]
  %s4 = inlined_call_operand.vmem [shape: f32[8,1], index: 4, kind: input, shape index: {}]
  %s5 = inlined_call_operand.vmem [shape: f32[8,1], index: 5, kind: input, shape index: {}]
  %s6 = inlined_call_operand.hbm [shape: bf16[256,256], index: 6, kind: input, shape index: {}]
  %s7 = inlined_call_operand.hbm [shape: bf16[256,256], index: 7, kind: input, shape index: {}]
  %s8 = inlined_call_operand.hbm [shape: f32[8,256], index: 8, kind: output, shape index: {0}]
  %s9 = inlined_call_operand.hbm [shape: f32[8,128], index: 9, kind: output, shape index: {1}]
  %10 = xla_tuple %s8, %s9
  %s11 = sld [smem:[#allocation0]]
  $region74: #{tpu_custom_call.1} parent=0
    _
  %s13 = ssub.s32 1, %s11
  %s14 = scalar_select 0, %s13, %s11
  $region1: #{tpu_custom_call.1} parent=0
    #allocation4 [shape = 'u8[4096]{0}', space=vmem, size = 0x1000, scoped, tag = 'input window, operand 1, single buffered']
    #allocation5 [shape = 's32[1]{0}', space=sflag, size = 0x4, scoped, tag = 'scoped memory for tpu_custom_call.1']
    #allocation6 [shape = 's32[1]{0}', space=sflag, size = 0x4, scoped, tag = 'scoped memory for tpu_custom_call.1']
    #allocation7 [shape = 'u8[131072]{0}', space=vmem, size = 0x20000, scoped, tag = 'input window, operand 6, single buffered']
    #allocation8 [shape = 's32[1]{0}', space=sflag, size = 0x4, scoped, tag = 'scoped memory for tpu_custom_call.1']
    #allocation9 [shape = 'u8[131072]{0}', space=vmem, size = 0x20000, scoped, tag = 'input window, operand 7, single buffered']
    #allocation10 [shape = 'u8[8192]{0}', space=vmem, size = 0x2000, scoped, tag = 'output window, operand 0, single buffered']
    #allocation11 [shape = 'u8[4096]{0}', space=vmem, size = 0x1000, scoped, tag = 'output window, operand 1, single buffered']
    #allocation12 [shape = 's32[1]{0}', space=sflag, size = 0x4, scoped, tag = 'scoped memory for tpu_custom_call.1']
    %15 = vsyncpa [#allocation5], 0
    %16 = vsyncpa [#allocation8], 0
    %17 = vsyncpa [#allocation6], 0
    %18 = vsyncpa [#allocation12], 0
    // Predicated region
    $region2: #{tpu_custom_call.1} parent=1 // pred_check
      _
    $region3: #{tpu_custom_call.1} parent=1 // pred_check_branch
      %20 = sbr.rel (0) target = $region5
    $region4: #{tpu_custom_call.1} parent=1 // pred_region
      _
    $region5: #{tpu_custom_call.1} parent=1 // pred_fallthru
      _
    // Predicated region
    $region6: #{tpu_custom_call.1} parent=1 // pred_check
      _
    $region7: #{tpu_custom_call.1} parent=1 // pred_check_branch
      %22 = sbr.rel (0) target = $region9
    $region8: #{tpu_custom_call.1} parent=1 // pred_region
      %s24 = ssub.s32 128, 128
      %25 = vsyncadd [#allocation5], %s24
      %s27 = sshll.u32 [#allocation4], 4
      %s28 = int_to_ptr.vmem [resolvable:$true] %s27
      %30 = dma.hbm_to_vmem [thread:$0]  %s1, 128, %s28, [#allocation5]
    $region9: #{tpu_custom_call.1} parent=1 // pred_fallthru
      _
    // Predicated region
    $region10: #{tpu_custom_call.1} parent=1 // pred_check
      _
    $region11: #{tpu_custom_call.1} parent=1 // pred_check_branch
      %32 = sbr.rel (0) target = $region13
    $region12: #{tpu_custom_call.1} parent=1 // pred_region
      _
    $region13: #{tpu_custom_call.1} parent=1 // pred_fallthru
      _
    // Predicated region
    $region14: #{tpu_custom_call.1} parent=1 // pred_check
      _
    $region15: #{tpu_custom_call.1} parent=1 // pred_check_branch
      %34 = sbr.rel (0) target = $region17
    $region16: #{tpu_custom_call.1} parent=1 // pred_region
      _
    $region17: #{tpu_custom_call.1} parent=1 // pred_fallthru
      _
    // Predicated region
    $region18: #{tpu_custom_call.1} parent=1 // pred_check
      _
    $region19: #{tpu_custom_call.1} parent=1 // pred_check_branch
      %36 = sbr.rel (0) target = $region21
    $region20: #{tpu_custom_call.1} parent=1 // pred_region
      _
    $region21: #{tpu_custom_call.1} parent=1 // pred_fallthru
      _
    // Predicated region
    $region22: #{tpu_custom_call.1} parent=1 // pred_check
      _
    $region23: #{tpu_custom_call.1} parent=1 // pred_check_branch
      %38 = sbr.rel (0) target = $region25
    $region24: #{tpu_custom_call.1} parent=1 // pred_region
      _
    $region25: #{tpu_custom_call.1} parent=1 // pred_fallthru
      _
    // Predicated region
    $region26: #{tpu_custom_call.1} parent=1 // pred_check
      _
    $region27: #{tpu_custom_call.1} parent=1 // pred_check_branch
      %40 = sbr.rel (0) target = $region29
    $region28: #{tpu_custom_call.1} parent=1 // pred_region
      %s42 = ssub.s32 4096, 4096
      %43 = vsyncadd [#allocation8], %s42
      %s44 = sshll.u32 [#allocation7], 4
      %s45 = int_to_ptr.vmem [resolvable:$true] %s44
      %50 = dma.hbm_to_vmem [thread:$0]  %s6, 4096, %s45, [#allocation8], 128, 128, 8
    $region29: #{tpu_custom_call.1} parent=1 // pred_fallthru
      _
    // Predicated region
    $region30: #{tpu_custom_call.1} parent=1 // pred_check
      _
    $region31: #{tpu_custom_call.1} parent=1 // pred_check_branch
      %52 = sbr.rel (0) target = $region33
    $region32: #{tpu_custom_call.1} parent=1 // pred_region
      %s54 = ssub.s32 4096, 4096
      %55 = vsyncadd [#allocation8], %s54
      %s56 = sshll.u32 [#allocation9], 4
      %s57 = int_to_ptr.vmem [resolvable:$true] %s56
      %62 = dma.hbm_to_vmem [thread:$0]  %s7, 4096, %s57, [#allocation8], 128, 128, 8
    $region33: #{tpu_custom_call.1} parent=1 // pred_fallthru
      _
    // Predicated region
    $region34: #{tpu_custom_call.1} parent=1 // pred_check
      _
    $region35: #{tpu_custom_call.1} parent=1 // pred_check_branch
      %64 = sbr.rel (0) target = $region37
    $region36: #{tpu_custom_call.1} parent=1 // pred_region
      %65 = dma.done [#allocation5], 128
    $region37: #{tpu_custom_call.1} parent=1 // pred_fallthru
      _
    // Predicated region
    $region38: #{tpu_custom_call.1} parent=1 // pred_check
      _
    $region39: #{tpu_custom_call.1} parent=1 // pred_check_branch
      %67 = sbr.rel (0) target = $region41
    $region40: #{tpu_custom_call.1} parent=1 // pred_region
      %68 = dma.done [#allocation8], 4096
    $region41: #{tpu_custom_call.1} parent=1 // pred_fallthru
      _
    // Predicated region
    $region42: #{tpu_custom_call.1} parent=1 // pred_check
      _
    $region43: #{tpu_custom_call.1} parent=1 // pred_check_branch
      %70 = sbr.rel (0) target = $region45
    $region44: #{tpu_custom_call.1} parent=1 // pred_region
      %71 = dma.done [#allocation8], 4096
    $region45: #{tpu_custom_call.1} parent=1 // pred_fallthru
      _
    %p72 = scmp.eq.s32.totalorder 0, 0
    // Predicated region
    $region46: #{tpu_custom_call.1} parent=1 // pred_check
      %p73 = pneg %p72
    $region47: #{tpu_custom_call.1} parent=1 // pred_check_branch
      %75 = sbr.rel (%p73) target = $region49
    $region48: #{tpu_custom_call.1} parent=1 // pred_region
      %76 = vst [vmem:[#allocation2] sm:$0xff] 0.0
      %77 = vst [vmem:[#allocation2 + $0x8] sm:$0xff] 0.0
    $region49: #{tpu_custom_call.1} parent=1 // pred_fallthru
      _
    %p78 = scmp.eq.s32.totalorder 0, 0
    // Predicated region
    $region50: #{tpu_custom_call.1} parent=1 // pred_check
      %p79 = pneg %p78
    $region51: #{tpu_custom_call.1} parent=1 // pred_check_branch
      %81 = sbr.rel (%p79) target = $region53
    $region52: #{tpu_custom_call.1} parent=1 // pred_region
      %v82 = vld [vmem:[%s2] sm:$0xff]
      %v83 = vld [vmem:[%s2 + $0x8] sm:$0xff]
      %84 = vst [vmem:[#allocation3] sm:$0xff] %v82
      %85 = vst [vmem:[#allocation3 + $0x8] sm:$0xff] %v83
    $region53: #{tpu_custom_call.1} parent=1 // pred_fallthru
      _
    %v86 = vld [vmem:[#allocation4] sm:$0xff]
    %v87 = vunpack.c.l.bf16 %v86
    %v88 = vunpack.c.h.bf16 %v86
    %v89 = vld [vmem:[%s3] sm:$0xff]
    %91 = vset.pattern.permute.xlu0 0
    %92 = vperm.xlu0 %91, %v89
    %v93 = vpop.permute.xlu0 %92
    %v95 = vmul.f32 %v87, %v93
    %v96 = vmul.f32 %v88, %v93
    %v97 = vld [vmem:[%s2] sm:$0xff]
    %v98 = vld [vmem:[%s2 + $0x8] sm:$0xff]
    %v99 = vld [vmem:[%s4] sm:$0xff]
    %101 = vset.pattern.permute.xlu0 0
    %102 = vperm.xlu0 %101, %v99
    %v103 = vpop.permute.xlu0 %102
    %v105 = vmul.f32 %v97, %v103
    %v106 = vmul.f32 %v98, %v103
    %v107 = vadd.f32 %v95, %v105
    %v108 = vadd.f32 %v96, %v106
    %v109 = vld [vmem:[#allocation2] sm:$0xff]
    %v110 = vld [vmem:[#allocation2 + $0x8] sm:$0xff]
    %v111 = vld [vmem:[%s0] sm:$0xff]
    %v112 = vld [vmem:[#allocation7] sm:$0xff]
    %v113 = vld [vmem:[#allocation7 + $0x8] sm:$0xff]
    %v114 = vld [vmem:[#allocation7 + $0x10] sm:$0xff]
    %v115 = vld [vmem:[#allocation7 + $0x18] sm:$0xff]
    %v116 = vld [vmem:[#allocation7 + $0x20] sm:$0xff]
    %v117 = vld [vmem:[#allocation7 + $0x28] sm:$0xff]
    %v118 = vld [vmem:[#allocation7 + $0x30] sm:$0xff]
    %v119 = vld [vmem:[#allocation7 + $0x38] sm:$0xff]
    %v120 = vld [vmem:[#allocation7 + $0x40] sm:$0xff]
    %v121 = vld [vmem:[#allocation7 + $0x48] sm:$0xff]
    %v122 = vld [vmem:[#allocation7 + $0x50] sm:$0xff]
    %v123 = vld [vmem:[#allocation7 + $0x58] sm:$0xff]
    %v124 = vld [vmem:[#allocation7 + $0x60] sm:$0xff]
    %v125 = vld [vmem:[#allocation7 + $0x68] sm:$0xff]
    %v126 = vld [vmem:[#allocation7 + $0x70] sm:$0xff]
    %v127 = vld [vmem:[#allocation7 + $0x78] sm:$0xff]
    %v128 = vld [vmem:[#allocation7 + $0x80] sm:$0xff]
    %v129 = vld [vmem:[#allocation7 + $0x88] sm:$0xff]
    %v130 = vld [vmem:[#allocation7 + $0x90] sm:$0xff]
    %v131 = vld [vmem:[#allocation7 + $0x98] sm:$0xff]
    %v132 = vld [vmem:[#allocation7 + $0xa0] sm:$0xff]
    %v133 = vld [vmem:[#allocation7 + $0xa8] sm:$0xff]
    %v134 = vld [vmem:[#allocation7 + $0xb0] sm:$0xff]
    %v135 = vld [vmem:[#allocation7 + $0xb8] sm:$0xff]
    %v136 = vld [vmem:[#allocation7 + $0xc0] sm:$0xff]
    %v137 = vld [vmem:[#allocation7 + $0xc8] sm:$0xff]
    %v138 = vld [vmem:[#allocation7 + $0xd0] sm:$0xff]
    %v139 = vld [vmem:[#allocation7 + $0xd8] sm:$0xff]
    %v140 = vld [vmem:[#allocation7 + $0xe0] sm:$0xff]
    %v141 = vld [vmem:[#allocation7 + $0xe8] sm:$0xff]
    %v142 = vld [vmem:[#allocation7 + $0xf0] sm:$0xff]
    %v143 = vld [vmem:[#allocation7 + $0xf8] sm:$0xff]
    %v144 = vpack.c.bf16 %v107, %v107
    %v145 = vpack.c.bf16 %v108, %v108
    %v146 = vld [vmem:[#allocation9] sm:$0xff]
    %v147 = vld [vmem:[#allocation9 + $0x8] sm:$0xff]
    %v148 = vld [vmem:[#allocation9 + $0x10] sm:$0xff]
    %v149 = vld [vmem:[#allocation9 + $0x18] sm:$0xff]
    %v150 = vld [vmem:[#allocation9 + $0x20] sm:$0xff]
    %v151 = vld [vmem:[#allocation9 + $0x28] sm:$0xff]
    %v152 = vld [vmem:[#allocation9 + $0x30] sm:$0xff]
    %v153 = vld [vmem:[#allocation9 + $0x38] sm:$0xff]
    %v154 = vld [vmem:[#allocation9 + $0x40] sm:$0xff]
    %v155 = vld [vmem:[#allocation9 + $0x48] sm:$0xff]
    %v156 = vld [vmem:[#allocation9 + $0x50] sm:$0xff]
    %v157 = vld [vmem:[#allocation9 + $0x58] sm:$0xff]
    %v158 = vld [vmem:[#allocation9 + $0x60] sm:$0xff]
    %v159 = vld [vmem:[#allocation9 + $0x68] sm:$0xff]
    %v160 = vld [vmem:[#allocation9 + $0x70] sm:$0xff]
    %v161 = vld [vmem:[#allocation9 + $0x78] sm:$0xff]
    %v162 = vld [vmem:[#allocation9 + $0x80] sm:$0xff]
    %v163 = vld [vmem:[#allocation9 + $0x88] sm:$0xff]
    %v164 = vld [vmem:[#allocation9 + $0x90] sm:$0xff]
    %v165 = vld [vmem:[#allocation9 + $0x98] sm:$0xff]
    %v166 = vld [vmem:[#allocation9 + $0xa0] sm:$0xff]
    %v167 = vld [vmem:[#allocation9 + $0xa8] sm:$0xff]
    %v168 = vld [vmem:[#allocation9 + $0xb0] sm:$0xff]
    %v169 = vld [vmem:[#allocation9 + $0xb8] sm:$0xff]
    %v170 = vld [vmem:[#allocation9 + $0xc0] sm:$0xff]
    %v171 = vld [vmem:[#allocation9 + $0xc8] sm:$0xff]
    %v172 = vld [vmem:[#allocation9 + $0xd0] sm:$0xff]
    %v173 = vld [vmem:[#allocation9 + $0xd8] sm:$0xff]
    %v174 = vld [vmem:[#allocation9 + $0xe0] sm:$0xff]
    %v175 = vld [vmem:[#allocation9 + $0xe8] sm:$0xff]
    %v176 = vld [vmem:[#allocation9 + $0xf0] sm:$0xff]
    %v177 = vld [vmem:[#allocation9 + $0xf8] sm:$0xff]
    %v210 = vunpack.c.l.b16 %v146
    %v211 = vunpack.c.h.b16 %v146
    %v212 = vunpack.c.l.b16 %v147
    %v213 = vunpack.c.h.b16 %v147
    %v214 = vunpack.c.l.b16 %v148
    %v215 = vunpack.c.h.b16 %v148
    %v216 = vunpack.c.l.b16 %v149
    %v217 = vunpack.c.h.b16 %v149
    %v218 = vunpack.c.l.b16 %v150
    %v219 = vunpack.c.h.b16 %v150
    %v220 = vunpack.c.l.b16 %v151
    %v221 = vunpack.c.h.b16 %v151
    %v222 = vunpack.c.l.b16 %v152
    %v223 = vunpack.c.h.b16 %v152
    %v224 = vunpack.c.l.b16 %v153
    %v225 = vunpack.c.h.b16 %v153
    %v226 = vunpack.c.l.b16 %v154
    %v227 = vunpack.c.h.b16 %v154
    %v228 = vunpack.c.l.b16 %v155
    %v229 = vunpack.c.h.b16 %v155
    %v230 = vunpack.c.l.b16 %v156
    %v231 = vunpack.c.h.b16 %v156
    %v232 = vunpack.c.l.b16 %v157
    %v233 = vunpack.c.h.b16 %v157
    %v234 = vunpack.c.l.b16 %v158
    %v235 = vunpack.c.h.b16 %v158
    %v236 = vunpack.c.l.b16 %v159
    %v237 = vunpack.c.h.b16 %v159
    %v238 = vunpack.c.l.b16 %v160
    %v239 = vunpack.c.h.b16 %v160
    %v240 = vunpack.c.l.b16 %v161
    %v241 = vunpack.c.h.b16 %v161
    %v242 = vunpack.c.l.b16 %v162
    %v243 = vunpack.c.h.b16 %v162
    %v244 = vunpack.c.l.b16 %v163
    %v245 = vunpack.c.h.b16 %v163
    %v246 = vunpack.c.l.b16 %v164
    %v247 = vunpack.c.h.b16 %v164
    %v248 = vunpack.c.l.b16 %v165
    %v249 = vunpack.c.h.b16 %v165
    %v250 = vunpack.c.l.b16 %v166
    %v251 = vunpack.c.h.b16 %v166
    %v252 = vunpack.c.l.b16 %v167
    %v253 = vunpack.c.h.b16 %v167
    %v254 = vunpack.c.l.b16 %v168
    %v255 = vunpack.c.h.b16 %v168
    %v256 = vunpack.c.l.b16 %v169
    %v257 = vunpack.c.h.b16 %v169
    %v258 = vunpack.c.l.b16 %v170
    %v259 = vunpack.c.h.b16 %v170
    %v260 = vunpack.c.l.b16 %v171
    %v261 = vunpack.c.h.b16 %v171
    %v262 = vunpack.c.l.b16 %v172
    %v263 = vunpack.c.h.b16 %v172
    %v264 = vunpack.c.l.b16 %v173
    %v265 = vunpack.c.h.b16 %v173
    %v266 = vunpack.c.l.b16 %v174
    %v267 = vunpack.c.h.b16 %v174
    %v268 = vunpack.c.l.b16 %v175
    %v269 = vunpack.c.h.b16 %v175
    %v270 = vunpack.c.l.b16 %v176
    %v271 = vunpack.c.h.b16 %v176
    %v272 = vunpack.c.l.b16 %v177
    %v273 = vunpack.c.h.b16 %v177
    %v274 = vpack.c.b16 %v212, %v210
    %v275 = vpack.c.b16 %v213, %v211
    %v276 = vpack.c.b16 %v216, %v214
    %v277 = vpack.c.b16 %v217, %v215
    %v278 = vpack.c.b16 %v220, %v218
    %v279 = vpack.c.b16 %v221, %v219
    %v280 = vpack.c.b16 %v224, %v222
    %v281 = vpack.c.b16 %v225, %v223
    %v282 = vpack.c.b16 %v228, %v226
    %v283 = vpack.c.b16 %v229, %v227
    %v284 = vpack.c.b16 %v232, %v230
    %v285 = vpack.c.b16 %v233, %v231
    %v286 = vpack.c.b16 %v236, %v234
    %v287 = vpack.c.b16 %v237, %v235
    %v288 = vpack.c.b16 %v240, %v238
    %v289 = vpack.c.b16 %v241, %v239
    %v290 = vpack.c.b16 %v244, %v242
    %v291 = vpack.c.b16 %v245, %v243
    %v292 = vpack.c.b16 %v248, %v246
    %v293 = vpack.c.b16 %v249, %v247
    %v294 = vpack.c.b16 %v252, %v250
    %v295 = vpack.c.b16 %v253, %v251
    %v296 = vpack.c.b16 %v256, %v254
    %v297 = vpack.c.b16 %v257, %v255
    %v298 = vpack.c.b16 %v260, %v258
    %v299 = vpack.c.b16 %v261, %v259
    %v300 = vpack.c.b16 %v264, %v262
    %v301 = vpack.c.b16 %v265, %v263
    %v302 = vpack.c.b16 %v268, %v266
    %v303 = vpack.c.b16 %v269, %v267
    %v304 = vpack.c.b16 %v272, %v270
    %v305 = vpack.c.b16 %v273, %v271
    %338 = vmatprep.subr.bf16.mxu0 %v275
    %339 = vmatpush1.bf16.msra.mxu0 %v274
    %340 = vmatprep.subr.bf16.mxu0 %v277
    %341 = vmatpush1.bf16.msra.mxu0 %v276
    %342 = vmatprep.subr.bf16.mxu0 %v279
    %343 = vmatpush1.bf16.msra.mxu0 %v278
    %344 = vmatprep.subr.bf16.mxu0 %v281
    %345 = vmatpush1.bf16.msra.mxu0 %v280
    %346 = vmatprep.subr.bf16.mxu0 %v283
    %347 = vmatpush1.bf16.msra.mxu0 %v282
    %348 = vmatprep.subr.bf16.mxu0 %v285
    %349 = vmatpush1.bf16.msra.mxu0 %v284
    %350 = vmatprep.subr.bf16.mxu0 %v287
    %351 = vmatpush1.bf16.msra.mxu0 %v286
    %352 = vmatprep.subr.bf16.mxu0 %v289
    %353 = vmatpush1.bf16.msra.mxu0 %v288
    %354 = vmatprep.subr.bf16.mxu0 %v291
    %355 = vmatpush1.bf16.msra.mxu0 %v290
    %356 = vmatprep.subr.bf16.mxu0 %v293
    %357 = vmatpush1.bf16.msra.mxu0 %v292
    %358 = vmatprep.subr.bf16.mxu0 %v295
    %359 = vmatpush1.bf16.msra.mxu0 %v294
    %360 = vmatprep.subr.bf16.mxu0 %v297
    %361 = vmatpush1.bf16.msra.mxu0 %v296
    %362 = vmatprep.subr.bf16.mxu0 %v299
    %363 = vmatpush1.bf16.msra.mxu0 %v298
    %364 = vmatprep.subr.bf16.mxu0 %v301
    %365 = vmatpush1.bf16.msra.mxu0 %v300
    %366 = vmatprep.subr.bf16.mxu0 %v303
    %367 = vmatpush1.bf16.msra.mxu0 %v302
    %368 = vmatprep.subr.bf16.mxu0 %v305
    %369 = vmatpush1.bf16.msra.mxu0 %v304
    %370 = vmatprep.mubr.bf16.mxu0 %v145
    %371 = vmatmul.mubr.bf16.gmra.mrb[0].mxu0 %v144
    %v372 = vpop.f32.mrb[0].mxu0
    %v373 = vadd.f32 0.0, %v372
    %v374 = vpop.f32.mrb[0].mxu0
    %v375 = vadd.f32 0.0, %v374
    %v376 = vpop.f32.mrb[0].mxu0
    %v377 = vpop.f32.mrb[0].mxu0
    %378 = vdwg.mxu0
    %v380 = vunpack.c.l.b16 %v111
    %v381 = vunpack.c.h.b16 %v111
    %v382 = vpack.c.b16 %v380, %v380
    %v383 = vpack.c.b16 %v381, %v381
    %v418 = vunpack.c.l.b16 %v112
    %v419 = vunpack.c.h.b16 %v112
    %v420 = vunpack.c.l.b16 %v113
    %v421 = vunpack.c.h.b16 %v113
    %v422 = vunpack.c.l.b16 %v114
    %v423 = vunpack.c.h.b16 %v114
    %v424 = vunpack.c.l.b16 %v115
    %v425 = vunpack.c.h.b16 %v115
    %v426 = vunpack.c.l.b16 %v116
    %v427 = vunpack.c.h.b16 %v116
    %v428 = vunpack.c.l.b16 %v117
    %v429 = vunpack.c.h.b16 %v117
    %v430 = vunpack.c.l.b16 %v118
    %v431 = vunpack.c.h.b16 %v118
    %v432 = vunpack.c.l.b16 %v119
    %v433 = vunpack.c.h.b16 %v119
    %v434 = vunpack.c.l.b16 %v120
    %v435 = vunpack.c.h.b16 %v120
    %v436 = vunpack.c.l.b16 %v121
    %v437 = vunpack.c.h.b16 %v121
    %v438 = vunpack.c.l.b16 %v122
    %v439 = vunpack.c.h.b16 %v122
    %v440 = vunpack.c.l.b16 %v123
    %v441 = vunpack.c.h.b16 %v123
    %v442 = vunpack.c.l.b16 %v124
    %v443 = vunpack.c.h.b16 %v124
    %v444 = vunpack.c.l.b16 %v125
    %v445 = vunpack.c.h.b16 %v125
    %v446 = vunpack.c.l.b16 %v126
    %v447 = vunpack.c.h.b16 %v126
    %v448 = vunpack.c.l.b16 %v127
    %v449 = vunpack.c.h.b16 %v127
    %v450 = vunpack.c.l.b16 %v128
    %v451 = vunpack.c.h.b16 %v128
    %v452 = vunpack.c.l.b16 %v129
    %v453 = vunpack.c.h.b16 %v129
    %v454 = vunpack.c.l.b16 %v130
    %v455 = vunpack.c.h.b16 %v130
    %v456 = vunpack.c.l.b16 %v131
    %v457 = vunpack.c.h.b16 %v131
    %v458 = vunpack.c.l.b16 %v132
    %v459 = vunpack.c.h.b16 %v132
    %v460 = vunpack.c.l.b16 %v133
    %v461 = vunpack.c.h.b16 %v133
    %v462 = vunpack.c.l.b16 %v134
    %v463 = vunpack.c.h.b16 %v134
    %v464 = vunpack.c.l.b16 %v135
    %v465 = vunpack.c.h.b16 %v135
    %v466 = vunpack.c.l.b16 %v136
    %v467 = vunpack.c.h.b16 %v136
    %v468 = vunpack.c.l.b16 %v137
    %v469 = vunpack.c.h.b16 %v137
    %v470 = vunpack.c.l.b16 %v138
    %v471 = vunpack.c.h.b16 %v138
    %v472 = vunpack.c.l.b16 %v139
    %v473 = vunpack.c.h.b16 %v139
    %v474 = vunpack.c.l.b16 %v140
    %v475 = vunpack.c.h.b16 %v140
    %v476 = vunpack.c.l.b16 %v141
    %v477 = vunpack.c.h.b16 %v141
    %v478 = vunpack.c.l.b16 %v142
    %v479 = vunpack.c.h.b16 %v142
    %v480 = vunpack.c.l.b16 %v143
    %v481 = vunpack.c.h.b16 %v143
    %v482 = vpack.c.b16 %v420, %v418
    %v483 = vpack.c.b16 %v421, %v419
    %v484 = vpack.c.b16 %v424, %v422
    %v485 = vpack.c.b16 %v425, %v423
    %v486 = vpack.c.b16 %v428, %v426
    %v487 = vpack.c.b16 %v429, %v427
    %v488 = vpack.c.b16 %v432, %v430
    %v489 = vpack.c.b16 %v433, %v431
    %v490 = vpack.c.b16 %v436, %v434
    %v491 = vpack.c.b16 %v437, %v435
    %v492 = vpack.c.b16 %v440, %v438
    %v493 = vpack.c.b16 %v441, %v439
    %v494 = vpack.c.b16 %v444, %v442
    %v495 = vpack.c.b16 %v445, %v443
    %v496 = vpack.c.b16 %v448, %v446
    %v497 = vpack.c.b16 %v449, %v447
    %v498 = vpack.c.b16 %v452, %v450
    %v499 = vpack.c.b16 %v453, %v451
    %v500 = vpack.c.b16 %v456, %v454
    %v501 = vpack.c.b16 %v457, %v455
    %v502 = vpack.c.b16 %v460, %v458
    %v503 = vpack.c.b16 %v461, %v459
    %v504 = vpack.c.b16 %v464, %v462
    %v505 = vpack.c.b16 %v465, %v463
    %v506 = vpack.c.b16 %v468, %v466
    %v507 = vpack.c.b16 %v469, %v467
    %v508 = vpack.c.b16 %v472, %v470
    %v509 = vpack.c.b16 %v473, %v471
    %v510 = vpack.c.b16 %v476, %v474
    %v511 = vpack.c.b16 %v477, %v475
    %v512 = vpack.c.b16 %v480, %v478
    %v513 = vpack.c.b16 %v481, %v479
    %546 = vmatprep.subr.bf16.mxu0 %v483
    %547 = vmatpush1.bf16.msra.mxu0 %v482
    %548 = vmatprep.subr.bf16.mxu0 %v485
    %549 = vmatpush1.bf16.msra.mxu0 %v484
    %550 = vmatprep.subr.bf16.mxu0 %v487
    %551 = vmatpush1.bf16.msra.mxu0 %v486
    %552 = vmatprep.subr.bf16.mxu0 %v489
    %553 = vmatpush1.bf16.msra.mxu0 %v488
    %554 = vmatprep.subr.bf16.mxu0 %v491
    %555 = vmatpush1.bf16.msra.mxu0 %v490
    %556 = vmatprep.subr.bf16.mxu0 %v493
    %557 = vmatpush1.bf16.msra.mxu0 %v492
    %558 = vmatprep.subr.bf16.mxu0 %v495
    %559 = vmatpush1.bf16.msra.mxu0 %v494
    %560 = vmatprep.subr.bf16.mxu0 %v497
    %561 = vmatpush1.bf16.msra.mxu0 %v496
    %562 = vmatprep.subr.bf16.mxu0 %v499
    %563 = vmatpush1.bf16.msra.mxu0 %v498
    %564 = vmatprep.subr.bf16.mxu0 %v501
    %565 = vmatpush1.bf16.msra.mxu0 %v500
    %566 = vmatprep.subr.bf16.mxu0 %v503
    %567 = vmatpush1.bf16.msra.mxu0 %v502
    %568 = vmatprep.subr.bf16.mxu0 %v505
    %569 = vmatpush1.bf16.msra.mxu0 %v504
    %570 = vmatprep.subr.bf16.mxu0 %v507
    %571 = vmatpush1.bf16.msra.mxu0 %v506
    %572 = vmatprep.subr.bf16.mxu0 %v509
    %573 = vmatpush1.bf16.msra.mxu0 %v508
    %574 = vmatprep.subr.bf16.mxu0 %v511
    %575 = vmatpush1.bf16.msra.mxu0 %v510
    %576 = vmatprep.subr.bf16.mxu0 %v513
    %577 = vmatpush1.bf16.msra.mxu0 %v512
    %578 = vmatprep.mubr.bf16.mxu0 %v383
    %579 = vmatmul.mubr.bf16.gmra.mrb[0].mxu0 %v382
    %v580 = vpop.f32.mrb[0].mxu0
    %v581 = vadd.f32 %v373, %v580
    %v582 = vpop.f32.mrb[0].mxu0
    %v583 = vadd.f32 %v375, %v582
    %v584 = vpop.f32.mrb[0].mxu0
    %v585 = vpop.f32.mrb[0].mxu0
    %586 = vdwg.mxu0
    %v587 = vadd.f32 %v109, %v581
    %v588 = vadd.f32 %v110, %v583
    %589 = vst [vmem:[#allocation2] sm:$0xff] %v587
    %590 = vst [vmem:[#allocation2 + $0x8] sm:$0xff] %v588
    // Predicated region
    $region54: #{tpu_custom_call.1} parent=1 // pred_check
      %p591 = pneg %p72
    $region55: #{tpu_custom_call.1} parent=1 // pred_check_branch
      %593 = sbr.rel (%p591) target = $region57
    $region56: #{tpu_custom_call.1} parent=1 // pred_region
      %s594 = smul.u32 0, 256
      %v595 = vlaneseq
      %v596 = vand.u32 %v595, 127
      %v597 = vadd.s32 %v596, 128
      %v598 = vstv %s594
      %v599 = vadd.s32 %v598, %v596
      %v600 = vadd.s32 %v598, %v597
      %vm601 = vcmp.lt.s32.totalorder %v599, 128
      %vm602 = vcmp.lt.s32.totalorder %v600, 128
      %v603 = vsub.s32 %v599, 128
      %v604 = vsub.s32 %v600, 128
      %v605 = vsel %vm601, %v599, %v603
      %v606 = vsel %vm602, %v600, %v604
      %v607 = vcvt.s32.f32 %v605
      %v608 = vcvt.s32.f32 %v606
      %v609 = vld [vmem:[%s5] sm:$0xff]
      %v610 = vmul.f32 %v607, -0.071955785
      %v611 = vmul.f32 %v608, -0.071955785
      %v612 = vmul.f32 %v610, 1.442695
      %v613 = vpow.pop %v612
      %v614 = vmul.f32 %v611, 1.442695
      %v615 = vpow.pop %v614
      %617 = vset.pattern.permute.xlu0 0
      %618 = vperm.xlu0 %617, %v609
      %v619 = vpop.permute.xlu0 %618
      %v621 = vmul.f32 %v619, %v613
      %v622 = vmul.f32 %v619, %v615
      %v623 = vand.u32 2147483647, %v621
      %vm624 = vcmp.le.f32.partialorder %v623, 0.7853982
      %vm625 = vcmp.lt.s32.totalorder %v621, 0
      %v626 = vand.u32 %v621, 2139095040
      %v627 = vshrl.u32 %v626, 23
      %v628 = vsub.s32 %v627, 127
      %v629 = vand.u32 2147483647, %v621
      %v630 = vand.u32 %v629, 8388607
      %v631 = vor.u32 %v630, 8388608
      %v632 = vsub.s32 0, %v631
      %v633 = vadd.s32 %v628, 1
      %vm634 = vcmp.gt.s32.totalorder %v633, 0
      %v635 = vsel %vm634, %v633, 0
      %v636 = vshrl.u32 %v635, 5
      %v637 = vand.u32 %v635, 31
      %v638 = vsub.s32 32, %v637
      %v639 = vshrl.u32 683565275, %v638
      %v640 = vshll.u32 683565275, %v637
      %v641 = vshrl.u32 2475754826, %v638
      %v642 = vor.u32 %v640, %v641
      %v643 = vshll.u32 2475754826, %v637
      %v644 = vshrl.u32 2131351028, %v638
      %v645 = vor.u32 %v643, %v644
      %v646 = vshll.u32 2131351028, %v637
      %v647 = vshrl.u32 2102212464, %v638
      %v648 = vor.u32 %v646, %v647
      %v649 = vshll.u32 2102212464, %v637
      %v650 = vshrl.u32 920167782, %v638
      %v651 = vor.u32 %v649, %v650
      %v652 = vshll.u32 920167782, %v637
      %v653 = vshrl.u32 1326507024, %v638
      %v654 = vor.u32 %v652, %v653
      %vm655 = vcmp.lt.s32.totalorder %v636, 1
      %vm656 = vcmp.lt.s32.totalorder %v636, 2
      %vm657 = vcmp.lt.s32.totalorder %v636, 3
      %vm658 = vcmp.lt.s32.totalorder %v636, 4
      %v659 = vsel %vm655, %v639, %v642
      %v660 = vsel %vm658, %v648, 2102212464
      %v661 = vsel %vm657, %v645, %v660
      %v662 = vsel %vm656, %v659, %v661
      %v663 = vsel %vm655, %v642, %v645
      %v664 = vsel %vm658, %v651, 920167782
      %v665 = vsel %vm657, %v648, %v664
      %v666 = vsel %vm656, %v663, %v665
      %v667 = vsel %vm655, %v645, %v648
      %v668 = vsel %vm658, %v654, 1326507024
      %v669 = vsel %vm657, %v651, %v668
      %v670 = vsel %vm656, %v667, %v669
      %v671 = vshll.u32 %v631, 8
      %v672 = vmul.u32.u64.compose %v671, %v670
      %v673 = vextract.low.u32 %v672
      %v674 = vextract.high.u32 %v672
      %v675 = vmul.u32.u64.compose %v671, %v666
      %v676 = vextract.low.u32 %v675
      %v677 = vextract.high.u32 %v675
      %v678 = vmul.u32 %v671, %v662
      %v679 = vadd.s32 %v674, %v676
      %vm680 = vc.u32 %v674, %v676
      %v681 = vadd.s32 %v677, 1
      %v682 = vsel %vm680, %v681, %v677
      %v683 = vadd.s32 %v678, %v682
      %v684 = vadd.s32 %v683, 536870912
      %v685 = vshrl.u32 %v684, 30
      %v686 = vshll.u32 %v685, 30
      %v687 = vsub.s32 %v683, %v686
      %vm688 = vcmp.lt.s32.totalorder %v687, 0
      %v689 = vsub.s32 0, %v687
      %v690 = vsel %vm688, %v689, %v687
      %v691 = vclz %v690
      %v692 = vsub.s32 %v691, 2
      %vm693 = vcmp.gt.s32.totalorder 0, %v692
      %v694 = vsel %vm693, 0, %v692
      %v695 = vsub.s32 32, %v694
      %v696 = vshll.u32 %v687, %v694
      %v697 = vshrl.u32 %v679, %v695
      %v698 = vor.u32 %v696, %v697
      %v699 = vsub.s32 4294967266, %v694
      %v700 = vadd.s32 %v699, 127
      %v701 = vshll.u32 %v700, 23
      %v702 = vor.u32 4788187, %v701
      %v703 = vand.u32 2147483647, %v702
      %v705 = vcvt.s32.f32 %v698
      %v706 = vmul.f32 %v705, %v703
      %v707 = vxor.u32 %v706, 2147483648
      %v708 = vsel %vm625, %v707, %v706
      %v709 = vsub.s32 4, %v685
      %v710 = vsel %vm625, %v709, %v685
      %v711 = vsel %vm624, %v621, %v708
      %v712 = vsel %vm624, 0, %v710
      %v713 = vcosq.f32.pop %v711
      %v714 = vsinq.f32.pop %v711
      %vm715 = vweird.f32 %v621
      %v716 = vadd.s32 %v712, 3
      %v717 = vand.u32 %v716, 3
      %vm718 = vcmp.lt.s32.totalorder %v717, 2
      %vm719 = vcmp.eq.s32.totalorder %v717, 0
      %v720 = vxor.u32 %v714, 2147483648
      %v721 = vsel %vm719, %v713, %v720
      %vm722 = vcmp.eq.s32.totalorder %v717, 2
      %v723 = vxor.u32 %v713, 2147483648
      %v724 = vsel %vm722, %v723, %v714
      %v725 = vsel %vm718, %v721, %v724
      %v726 = vsel %vm715, nan, %v725
      %v727 = vand.u32 2147483647, %v622
      %vm728 = vcmp.le.f32.partialorder %v727, 0.7853982
      %vm729 = vcmp.lt.s32.totalorder %v622, 0
      %v730 = vand.u32 %v622, 2139095040
      %v731 = vshrl.u32 %v730, 23
      %v732 = vsub.s32 %v731, 127
      %v733 = vand.u32 2147483647, %v622
      %v734 = vand.u32 %v733, 8388607
      %v735 = vor.u32 %v734, 8388608
      %v736 = vsub.s32 0, %v735
      %v737 = vadd.s32 %v732, 1
      %vm738 = vcmp.gt.s32.totalorder %v737, 0
      %v739 = vsel %vm738, %v737, 0
      %v740 = vshrl.u32 %v739, 5
      %v741 = vand.u32 %v739, 31
      %v742 = vsub.s32 32, %v741
      %v743 = vshrl.u32 683565275, %v742
      %v744 = vshll.u32 683565275, %v741
      %v745 = vshrl.u32 2475754826, %v742
      %v746 = vor.u32 %v744, %v745
      %v747 = vshll.u32 2475754826, %v741
      %v748 = vshrl.u32 2131351028, %v742
      %v749 = vor.u32 %v747, %v748
      %v750 = vshll.u32 2131351028, %v741
      %v751 = vshrl.u32 2102212464, %v742
      %v752 = vor.u32 %v750, %v751
      %v753 = vshll.u32 2102212464, %v741
      %v754 = vshrl.u32 920167782, %v742
      %v755 = vor.u32 %v753, %v754
      %v756 = vshll.u32 920167782, %v741
      %v757 = vshrl.u32 1326507024, %v742
      %v758 = vor.u32 %v756, %v757
      %vm759 = vcmp.lt.s32.totalorder %v740, 1
      %vm760 = vcmp.lt.s32.totalorder %v740, 2
      %vm761 = vcmp.lt.s32.totalorder %v740, 3
      %vm762 = vcmp.lt.s32.totalorder %v740, 4
      %v763 = vsel %vm759, %v743, %v746
      %v764 = vsel %vm762, %v752, 2102212464
      %v765 = vsel %vm761, %v749, %v764
      %v766 = vsel %vm760, %v763, %v765
      %v767 = vsel %vm759, %v746, %v749
      %v768 = vsel %vm762, %v755, 920167782
      %v769 = vsel %vm761, %v752, %v768
      %v770 = vsel %vm760, %v767, %v769
      %v771 = vsel %vm759, %v749, %v752
      %v772 = vsel %vm762, %v758, 1326507024
      %v773 = vsel %vm761, %v755, %v772
      %v774 = vsel %vm760, %v771, %v773
      %v775 = vshll.u32 %v735, 8
      %v776 = vmul.u32.u64.compose %v775, %v774
      %v777 = vextract.low.u32 %v776
      %v778 = vextract.high.u32 %v776
      %v779 = vmul.u32.u64.compose %v775, %v770
      %v780 = vextract.low.u32 %v779
      %v781 = vextract.high.u32 %v779
      %v782 = vmul.u32 %v775, %v766
      %v783 = vadd.s32 %v778, %v780
      %vm784 = vc.u32 %v778, %v780
      %v785 = vadd.s32 %v781, 1
      %v786 = vsel %vm784, %v785, %v781
      %v787 = vadd.s32 %v782, %v786
      %v788 = vadd.s32 %v787, 536870912
      %v789 = vshrl.u32 %v788, 30
      %v790 = vshll.u32 %v789, 30
      %v791 = vsub.s32 %v787, %v790
      %vm792 = vcmp.lt.s32.totalorder %v791, 0
      %v793 = vsub.s32 0, %v791
      %v794 = vsel %vm792, %v793, %v791
      %v795 = vclz %v794
      %v796 = vsub.s32 %v795, 2
      %vm797 = vcmp.gt.s32.totalorder 0, %v796
      %v798 = vsel %vm797, 0, %v796
      %v799 = vsub.s32 32, %v798
      %v800 = vshll.u32 %v791, %v798
      %v801 = vshrl.u32 %v783, %v799
      %v802 = vor.u32 %v800, %v801
      %v803 = vsub.s32 4294967266, %v798
      %v804 = vadd.s32 %v803, 127
      %v805 = vshll.u32 %v804, 23
      %v806 = vor.u32 4788187, %v805
      %v807 = vand.u32 2147483647, %v806
      %v809 = vcvt.s32.f32 %v802
      %v810 = vmul.f32 %v809, %v807
      %v811 = vxor.u32 %v810, 2147483648
      %v812 = vsel %vm729, %v811, %v810
      %v813 = vsub.s32 4, %v789
      %v814 = vsel %vm729, %v813, %v789
      %v815 = vsel %vm728, %v622, %v812
      %v816 = vsel %vm728, 0, %v814
      %v817 = vcosq.f32.pop %v815
      %v818 = vsinq.f32.pop %v815
      %vm819 = vweird.f32 %v622
      %v820 = vadd.s32 %v816, 3
      %v821 = vand.u32 %v820, 3
      %vm822 = vcmp.lt.s32.totalorder %v821, 2
      %vm823 = vcmp.eq.s32.totalorder %v821, 0
      %v824 = vxor.u32 %v818, 2147483648
      %v825 = vsel %vm823, %v817, %v824
      %vm826 = vcmp.eq.s32.totalorder %v821, 2
      %v827 = vxor.u32 %v817, 2147483648
      %v828 = vsel %vm826, %v827, %v818
      %v829 = vsel %vm822, %v825, %v828
      %v830 = vsel %vm819, nan, %v829
      %v831 = vand.u32 2147483647, %v621
      %vm832 = vcmp.le.f32.partialorder %v831, 0.7853982
      %vm833 = vcmp.lt.s32.totalorder %v621, 0
      %v834 = vand.u32 %v621, 2139095040
      %v835 = vshrl.u32 %v834, 23
      %v836 = vsub.s32 %v835, 127
      %v837 = vand.u32 2147483647, %v621
      %v838 = vand.u32 %v837, 8388607
      %v839 = vor.u32 %v838, 8388608
      %v840 = vsub.s32 0, %v839
      %v841 = vadd.s32 %v836, 1
      %vm842 = vcmp.gt.s32.totalorder %v841, 0
      %v843 = vsel %vm842, %v841, 0
      %v844 = vshrl.u32 %v843, 5
      %v845 = vand.u32 %v843, 31
      %v846 = vsub.s32 32, %v845
      %v847 = vshrl.u32 683565275, %v846
      %v848 = vshll.u32 683565275, %v845
      %v849 = vshrl.u32 2475754826, %v846
      %v850 = vor.u32 %v848, %v849
      %v851 = vshll.u32 2475754826, %v845
      %v852 = vshrl.u32 2131351028, %v846
      %v853 = vor.u32 %v851, %v852
      %v854 = vshll.u32 2131351028, %v845
      %v855 = vshrl.u32 2102212464, %v846
      %v856 = vor.u32 %v854, %v855
      %v857 = vshll.u32 2102212464, %v845
      %v858 = vshrl.u32 920167782, %v846
      %v859 = vor.u32 %v857, %v858
      %v860 = vshll.u32 920167782, %v845
      %v861 = vshrl.u32 1326507024, %v846
      %v862 = vor.u32 %v860, %v861
      %vm863 = vcmp.lt.s32.totalorder %v844, 1
      %vm864 = vcmp.lt.s32.totalorder %v844, 2
      %vm865 = vcmp.lt.s32.totalorder %v844, 3
      %vm866 = vcmp.lt.s32.totalorder %v844, 4
      %v867 = vsel %vm863, %v847, %v850
      %v868 = vsel %vm866, %v856, 2102212464
      %v869 = vsel %vm865, %v853, %v868
      %v870 = vsel %vm864, %v867, %v869
      %v871 = vsel %vm863, %v850, %v853
      %v872 = vsel %vm866, %v859, 920167782
      %v873 = vsel %vm865, %v856, %v872
      %v874 = vsel %vm864, %v871, %v873
      %v875 = vsel %vm863, %v853, %v856
      %v876 = vsel %vm866, %v862, 1326507024
      %v877 = vsel %vm865, %v859, %v876
      %v878 = vsel %vm864, %v875, %v877
      %v879 = vshll.u32 %v839, 8
      %v880 = vmul.u32.u64.compose %v879, %v878
      %v881 = vextract.low.u32 %v880
      %v882 = vextract.high.u32 %v880
      %v883 = vmul.u32.u64.compose %v879, %v874
      %v884 = vextract.low.u32 %v883
      %v885 = vextract.high.u32 %v883
      %v886 = vmul.u32 %v879, %v870
      %v887 = vadd.s32 %v882, %v884
      %vm888 = vc.u32 %v882, %v884
      %v889 = vadd.s32 %v885, 1
      %v890 = vsel %vm888, %v889, %v885
      %v891 = vadd.s32 %v886, %v890
      %v892 = vadd.s32 %v891, 536870912
      %v893 = vshrl.u32 %v892, 30
      %v894 = vshll.u32 %v893, 30
      %v895 = vsub.s32 %v891, %v894
      %vm896 = vcmp.lt.s32.totalorder %v895, 0
      %v897 = vsub.s32 0, %v895
      %v898 = vsel %vm896, %v897, %v895
      %v899 = vclz %v898
      %v900 = vsub.s32 %v899, 2
      %vm901 = vcmp.gt.s32.totalorder 0, %v900
      %v902 = vsel %vm901, 0, %v900
      %v903 = vsub.s32 32, %v902
      %v904 = vshll.u32 %v895, %v902
      %v905 = vshrl.u32 %v887, %v903
      %v906 = vor.u32 %v904, %v905
      %v907 = vsub.s32 4294967266, %v902
      %v908 = vadd.s32 %v907, 127
      %v909 = vshll.u32 %v908, 23
      %v910 = vor.u32 4788187, %v909
      %v911 = vand.u32 2147483647, %v910
      %v913 = vcvt.s32.f32 %v906
      %v914 = vmul.f32 %v913, %v911
      %v915 = vxor.u32 %v914, 2147483648
      %v916 = vsel %vm833, %v915, %v914
      %v917 = vsub.s32 4, %v893
      %v918 = vsel %vm833, %v917, %v893
      %v919 = vsel %vm832, %v621, %v916
      %v920 = vsel %vm832, 0, %v918
      %v921 = vcosq.f32.pop %v919
      %v922 = vsinq.f32.pop %v919
      %vm923 = vweird.f32 %v621
      %v924 = vand.u32 %v920, 3
      %vm925 = vcmp.lt.s32.totalorder %v924, 2
      %vm926 = vcmp.eq.s32.totalorder %v924, 0
      %v927 = vxor.u32 %v922, 2147483648
      %v928 = vsel %vm926, %v921, %v927
      %vm929 = vcmp.eq.s32.totalorder %v924, 2
      %v930 = vxor.u32 %v921, 2147483648
      %v931 = vsel %vm929, %v930, %v922
      %v932 = vsel %vm925, %v928, %v931
      %v933 = vsel %vm923, nan, %v932
      %v934 = vand.u32 2147483647, %v622
      %vm935 = vcmp.le.f32.partialorder %v934, 0.7853982
      %vm936 = vcmp.lt.s32.totalorder %v622, 0
      %v937 = vand.u32 %v622, 2139095040
      %v938 = vshrl.u32 %v937, 23
      %v939 = vsub.s32 %v938, 127
      %v940 = vand.u32 2147483647, %v622
      %v941 = vand.u32 %v940, 8388607
      %v942 = vor.u32 %v941, 8388608
      %v943 = vsub.s32 0, %v942
      %v944 = vadd.s32 %v939, 1
      %vm945 = vcmp.gt.s32.totalorder %v944, 0
      %v946 = vsel %vm945, %v944, 0
      %v947 = vshrl.u32 %v946, 5
      %v948 = vand.u32 %v946, 31
      %v949 = vsub.s32 32, %v948
      %v950 = vshrl.u32 683565275, %v949
      %v951 = vshll.u32 683565275, %v948
      %v952 = vshrl.u32 2475754826, %v949
      %v953 = vor.u32 %v951, %v952
      %v954 = vshll.u32 2475754826, %v948
      %v955 = vshrl.u32 2131351028, %v949
      %v956 = vor.u32 %v954, %v955
      %v957 = vshll.u32 2131351028, %v948
      %v958 = vshrl.u32 2102212464, %v949
      %v959 = vor.u32 %v957, %v958
      %v960 = vshll.u32 2102212464, %v948
      %v961 = vshrl.u32 920167782, %v949
      %v962 = vor.u32 %v960, %v961
      %v963 = vshll.u32 920167782, %v948
      %v964 = vshrl.u32 1326507024, %v949
      %v965 = vor.u32 %v963, %v964
      %vm966 = vcmp.lt.s32.totalorder %v947, 1
      %vm967 = vcmp.lt.s32.totalorder %v947, 2
      %vm968 = vcmp.lt.s32.totalorder %v947, 3
      %vm969 = vcmp.lt.s32.totalorder %v947, 4
      %v970 = vsel %vm966, %v950, %v953
      %v971 = vsel %vm969, %v959, 2102212464
      %v972 = vsel %vm968, %v956, %v971
      %v973 = vsel %vm967, %v970, %v972
      %v974 = vsel %vm966, %v953, %v956
      %v975 = vsel %vm969, %v962, 920167782
      %v976 = vsel %vm968, %v959, %v975
      %v977 = vsel %vm967, %v974, %v976
      %v978 = vsel %vm966, %v956, %v959
      %v979 = vsel %vm969, %v965, 1326507024
      %v980 = vsel %vm968, %v962, %v979
      %v981 = vsel %vm967, %v978, %v980
      %v982 = vshll.u32 %v942, 8
      %v983 = vmul.u32.u64.compose %v982, %v981
      %v984 = vextract.low.u32 %v983
      %v985 = vextract.high.u32 %v983
      %v986 = vmul.u32.u64.compose %v982, %v977
      %v987 = vextract.low.u32 %v986
      %v988 = vextract.high.u32 %v986
      %v989 = vmul.u32 %v982, %v973
      %v990 = vadd.s32 %v985, %v987
      %vm991 = vc.u32 %v985, %v987
      %v992 = vadd.s32 %v988, 1
      %v993 = vsel %vm991, %v992, %v988
      %v994 = vadd.s32 %v989, %v993
      %v995 = vadd.s32 %v994, 536870912
      %v996 = vshrl.u32 %v995, 30
      %v997 = vshll.u32 %v996, 30
      %v998 = vsub.s32 %v994, %v997
      %vm999 = vcmp.lt.s32.totalorder %v998, 0
      %v1000 = vsub.s32 0, %v998
      %v1001 = vsel %vm999, %v1000, %v998
      %v1002 = vclz %v1001
      %v1003 = vsub.s32 %v1002, 2
      %vm1004 = vcmp.gt.s32.totalorder 0, %v1003
      %v1005 = vsel %vm1004, 0, %v1003
      %v1006 = vsub.s32 32, %v1005
      %v1007 = vshll.u32 %v998, %v1005
      %v1008 = vshrl.u32 %v990, %v1006
      %v1009 = vor.u32 %v1007, %v1008
      %v1010 = vsub.s32 4294967266, %v1005
      %v1011 = vadd.s32 %v1010, 127
      %v1012 = vshll.u32 %v1011, 23
      %v1013 = vor.u32 4788187, %v1012
      %v1014 = vand.u32 2147483647, %v1013
      %v1016 = vcvt.s32.f32 %v1009
      %v1017 = vmul.f32 %v1016, %v1014
      %v1018 = vxor.u32 %v1017, 2147483648
      %v1019 = vsel %vm936, %v1018, %v1017
      %v1020 = vsub.s32 4, %v996
      %v1021 = vsel %vm936, %v1020, %v996
      %v1022 = vsel %vm935, %v622, %v1019
      %v1023 = vsel %vm935, 0, %v1021
      %v1024 = vcosq.f32.pop %v1022
      %v1025 = vsinq.f32.pop %v1022
      %vm1026 = vweird.f32 %v622
      %v1027 = vand.u32 %v1023, 3
      %vm1028 = vcmp.lt.s32.totalorder %v1027, 2
      %vm1029 = vcmp.eq.s32.totalorder %v1027, 0
      %v1030 = vxor.u32 %v1025, 2147483648
      %v1031 = vsel %vm1029, %v1024, %v1030
      %vm1032 = vcmp.eq.s32.totalorder %v1027, 2
      %v1033 = vxor.u32 %v1024, 2147483648
      %v1034 = vsel %vm1032, %v1033, %v1025
      %v1035 = vsel %vm1028, %v1031, %v1034
      %v1036 = vsel %vm1026, nan, %v1035
      %v1037 = vsel %vm601, %v726, %v933
      %v1038 = vsel %vm602, %v830, %v1036
      %v1039 = vld [vmem:[#allocation2] sm:$0xff]
      %v1040 = vld [vmem:[#allocation2 + $0x8] sm:$0xff]
      %v1041 = vadd.f32 %v1039, %v1037
      %v1042 = vadd.f32 %v1040, %v1038
      %v1043 = vtanh.pop %v1041
      %v1044 = vtanh.pop %v1042
      %1045 = vst [vmem:[#allocation10] sm:$0xff] %v1043
      %1046 = vst [vmem:[#allocation10 + $0x8] sm:$0xff] %v1044
      %v1047 = vld [vmem:[#allocation3] sm:$0xff]
      %v1048 = vld [vmem:[#allocation3 + $0x8] sm:$0xff]
      %v1049 = vsub.f32 %v1047, %v1043
      %v1050 = vsub.f32 %v1048, %v1044
      %v1051 = vmul.f32 %v1049, %v1049
      %v1052 = vmul.f32 %v1050, %v1050
      %v1053 = vadd.f32 %v1051, %v1052
      %1054 = vst [vmem:[#allocation11] sm:$0xff] %v1053
    $region57: #{tpu_custom_call.1} parent=1 // pred_fallthru
      _
    // Predicated region
    $region58: #{tpu_custom_call.1} parent=1 // pred_check
      _
    $region59: #{tpu_custom_call.1} parent=1 // pred_check_branch
      %1056 = sbr.rel (0) target = $region61
    $region60: #{tpu_custom_call.1} parent=1 // pred_region
      %s1058 = ssub.s32 256, 256
      %1059 = vsyncadd [#allocation6], %s1058
      %s1061 = sshll.u32 [#allocation10], 4
      %s1062 = int_to_ptr.vmem [resolvable:$true] %s1061
      %1064 = dma.vmem_to_hbm [thread:$0]  %s1062, 256, %s8, [#allocation6]
    $region61: #{tpu_custom_call.1} parent=1 // pred_fallthru
      _
    // Predicated region
    $region62: #{tpu_custom_call.1} parent=1 // pred_check
      _
    $region63: #{tpu_custom_call.1} parent=1 // pred_check_branch
      %1066 = sbr.rel (0) target = $region65
    $region64: #{tpu_custom_call.1} parent=1 // pred_region
      %s1068 = ssub.s32 128, 128
      %1069 = vsyncadd [#allocation12], %s1068
      %s1071 = sshll.u32 [#allocation11], 4
      %s1072 = int_to_ptr.vmem [resolvable:$true] %s1071
      %1074 = dma.vmem_to_hbm [thread:$0]  %s1072, 128, %s9, [#allocation12]
    $region65: #{tpu_custom_call.1} parent=1 // pred_fallthru
      _
    // Predicated region
    $region66: #{tpu_custom_call.1} parent=1 // pred_check
      _
    $region67: #{tpu_custom_call.1} parent=1 // pred_check_branch
      %1076 = sbr.rel (0) target = $region69
    $region68: #{tpu_custom_call.1} parent=1 // pred_region
      %1077 = dma.done [#allocation6], 256
    $region69: #{tpu_custom_call.1} parent=1 // pred_fallthru
      _
    // Predicated region
    $region70: #{tpu_custom_call.1} parent=1 // pred_check
      _
    $region71: #{tpu_custom_call.1} parent=1 // pred_check_branch
      %1079 = sbr.rel (0) target = $region73
    $region72: #{tpu_custom_call.1} parent=1 // pred_region
      %1080 = dma.done [#allocation12], 128
    $region73: #{tpu_custom_call.1} parent=1 // pred_fallthru
      _
    %1081 = vsyncpa [#allocation5], 1
    %1082 = vsyncpa [#allocation8], 1
    %1083 = vsyncpa [#allocation6], 1
    %1084 = vsyncpa [#allocation12], 1

</llo_original>
